<compile_context>
chip_gen: v7x
topology: tpu7x:2x2x1
jax: 0.10.0
libtpu: 0.0.40
codegen_flags: <defaults>
</compile_context>

<pallas_src>
import functools

import jax
import jax.numpy as jnp
from jax.experimental import pallas as pl
from jax.experimental.pallas import tpu as pltpu

LANE = 128            # vreg lane width
SUBLANE = 8           # f32 sublane count
MAX_TILE_ROWS = 4096  # (4096, 128) f32 tile = 2 MiB per input per grid step


@functools.lru_cache(maxsize=None)
def _num_core_slots():
    """Best-effort TensorCores-per-chip detection (2 on v7x, else 1)."""
    try:
        info = pltpu.get_tpu_info()
    except Exception:
        return 1
    for attr in ("num_tensorcores", "tensorcores_per_chip", "num_cores",
                 "cores_per_chip"):
        val = getattr(info, attr, None)
        if isinstance(val, int) and val >= 1:
            return min(int(val), 2)
    return 1


def _round_up(x, m):
    return (x + m - 1) // m * m


def _mse_partial_kernel(pred_ref, lab_ref, out_ref, *, rows, tile_rows,
                        per_slot_blocks):
    """Accumulates a per-core-slot (8, 128) partial sum of (pred - lab)^2.

    The output block (1, 8, 128) keeps the same block index across the
    reduction axis (grid axis 1), so it stays resident in VMEM; each step's
    full-tile square is reduced to one vreg with leading-axis adds (pure VPU,
    no XLU) before the tiny accumulate.
    """
    c = pl.program_id(0)   # core slot ("parallel")
    i = pl.program_id(1)   # reduction step ("arbitrary")

    @pl.when(i == 0)
    def _init():
        out_ref[...] = jnp.zeros_like(out_ref)

    d = pred_ref[...].astype(jnp.float32) - lab_ref[...].astype(jnp.float32)
    sq = d * d   # torch.pow(torch.abs(x), 2) == x*x for real inputs

    blk = c * per_slot_blocks + i        # UNclamped logical block index
    row_start = blk * tile_rows

    # Fast path: block fully inside the array -> unmasked reduce + accumulate.
    @pl.when(row_start + tile_rows <= rows)
    def _full():
        out_ref[0] += jnp.sum(
            sq.reshape(tile_rows // SUBLANE, SUBLANE, LANE), axis=0)

    # Slow path (ragged last block / clamped duplicate blocks): zero out rows
    # beyond the logical array before reducing.  jnp.where is a select, so any
    # NaN/Inf produced from garbage edge-block data is dropped.
    @pl.when(row_start + tile_rows > rows)
    def _partial():
        row_ids = row_start + jax.lax.broadcasted_iota(
            jnp.int32, (tile_rows, LANE), 0)
        masked = jnp.where(row_ids < rows, sq, 0.0)
        out_ref[0] += jnp.sum(
            masked.reshape(tile_rows // SUBLANE, SUBLANE, LANE), axis=0)


@jax.jit
def loss_mse(pred, coslabel):
    """Pallas equivalent of Loss_mse.forward. Returns a float32 scalar."""
    assert pred.shape == coslabel.shape, "pred/coslabel shape mismatch"
    n = pred.size

    p = pred.reshape(-1)
    l = coslabel.reshape(-1)

    # Handle a <128-element tail with a tiny jnp expression instead of
    # jnp.pad-copying both full operands.  Most DL shapes have n % 128 == 0.
    tail = n % LANE
    if tail:
        dt = (p[n - tail:].astype(jnp.float32)
              - l[n - tail:].astype(jnp.float32))
        tail_sum = jnp.sum(dt * dt)
        p = p[:n - tail]
        l = l[:n - tail]
    else:
        tail_sum = jnp.float32(0.0)

    n_main = n - tail
    if n_main == 0:
        return (tail_sum / jnp.float32(n)).astype(jnp.float32)

    rows = n_main // LANE
    p2 = p.reshape(rows, LANE)       # lane-dense slab (metadata-only reshape)
    l2 = l.reshape(rows, LANE)

    # tile_rows is a multiple of 8 so both the (8,128) block constraint and
    # the in-kernel (tile_rows//8, 8, 128) reshape hold; any ragged edge
    # (block extending past `rows`) is masked inside the kernel.
    tile_rows = min(MAX_TILE_ROWS, _round_up(rows, SUBLANE))
    total_blocks = pl.cdiv(rows, tile_rows)

    # 2-TensorCore split only where it can help (v7x) and there is enough work.
    num_slots = _num_core_slots() if total_blocks >= 2 else 1
    per_slot_blocks = pl.cdiv(total_blocks, num_slots)

    def in_idx(c, i):
        # Clamp so every DMA stays in-bounds; duplicate / out-of-range blocks
        # are fully masked in the kernel (which uses the UNclamped index).
        return (jnp.minimum(c * per_slot_blocks + i, total_blocks - 1), 0)

    itemsize = jnp.dtype(pred.dtype).itemsize
    cost = pl.CostEstimate(
        flops=3 * n_main,
        bytes_accessed=2 * n_main * itemsize + num_slots * SUBLANE * LANE * 4,
        transcendentals=0,
    )

    partial = pl.pallas_call(
        functools.partial(_mse_partial_kernel, rows=rows, tile_rows=tile_rows,
                          per_slot_blocks=per_slot_blocks),
        out_shape=jax.ShapeDtypeStruct((num_slots, SUBLANE, LANE),
                                       jnp.float32),
        grid_spec=pltpu.PrefetchScalarGridSpec(
            num_scalar_prefetch=0,
            grid=(num_slots, per_slot_blocks),
            in_specs=[pl.BlockSpec((tile_rows, LANE), in_idx),
                      pl.BlockSpec((tile_rows, LANE), in_idx)],
            out_specs=pl.BlockSpec((1, SUBLANE, LANE),
                                   lambda c, i: (c, 0, 0)),
        ),
        compiler_params=pltpu.CompilerParams(
            # TODO(synk): on v7x, profile to confirm "parallel" shards the
            # slot axis across both TensorCores; if not, switch to
            # CORE_PARALLEL / pl.core_map with an explicit row split.
            dimension_semantics=("parallel", "arbitrary"),
            vmem_limit_bytes=32 * 1024 * 1024,
        ),
        cost_estimate=cost,
    )(p2, l2)

    # Final reduce of the tiny (num_slots, 8, 128) partial-sum slab + mean
    # over the ORIGINAL element count n.
    return ((jnp.sum(partial) + tail_sum) / jnp.float32(n)).astype(jnp.float32)


# TODO(synk): loss_txt_path file writing + datetime timestamping is host-side
# I/O with no Pallas equivalent; intentionally omitted.

if __name__ == "__main__":
    key = jax.random.PRNGKey(0)
    k1, k2 = jax.random.split(key)
    shape = (2, 4, 16, 16)  # NCHW, small synthetic shapes
    pred = jax.random.normal(k1, shape, dtype=jnp.float32)
    coslabel = jax.random.normal(k2, shape, dtype=jnp.float32)

    loss = jax.block_until_ready(loss_mse(pred, coslabel))

    ref = jnp.mean(jnp.abs(pred - coslabel) ** 2)
    assert jnp.allclose(loss, ref, rtol=1e-5, atol=1e-6), (loss, ref)

    print("KERNEL_OK")
</pallas_src>

<mosaic_0001>
module attributes {stable_mosaic.version = 11 : i64} {
  func.func @_mse_partial_kernel(%arg0: i32, %arg1: i32, %arg2: memref<16x128xf32, #tpu.memory_space<vmem>>, %arg3: memref<16x128xf32, #tpu.memory_space<vmem>>, %arg4: memref<1x8x128xf32, #tpu.memory_space<vmem>>) attributes {dimension_semantics = [#tpu.dimension_semantics<parallel>, #tpu.dimension_semantics<arbitrary>], iteration_bounds = array<i64: 1, 1>, scalar_prefetch = 0 : i64, scratch_operands = 0 : i64, tpu.core_type = #tpu.core_type<tc>, window_params = [{transform_indices = @transform_0, window_bounds = array<i64: 16, 128>}, {transform_indices = @transform_1, window_bounds = array<i64: 16, 128>}, {transform_indices = @transform_2, window_bounds = array<i64: 1, 8, 128>}]} {
    %c0_i32 = arith.constant 0 : i32
    %0 = arith.cmpi eq, %arg1, %c0_i32 : i32
    %1 = arith.extui %0 : i1 to i32
    %c0_i32_0 = arith.constant 0 : i32
    %2 = arith.cmpi ne, %1, %c0_i32_0 : i32
    scf.if %2 {
      %cst = arith.constant 0.000000e+00 : f32
      %18 = vector.broadcast %cst : f32 to vector<1x8x128xf32>
      %c0_10 = arith.constant 0 : index
      %c0_11 = arith.constant 0 : index
      %c0_12 = arith.constant 0 : index
      %19 = vector.load %arg4[%c0_10, %c0_11, %c0_12] : memref<1x8x128xf32, #tpu.memory_space<vmem>>, vector<1x8x128xf32>
      tpu.vector_store %arg4[%c0_10, %c0_11, %c0_12], %18 {strides = array<i32>} : memref<1x8x128xf32, #tpu.memory_space<vmem>>, vector<1x8x128xf32>,
    } else {
    }
    %c0 = arith.constant 0 : index
    %c0_1 = arith.constant 0 : index
    %3 = vector.load %arg2[%c0, %c0_1] : memref<16x128xf32, #tpu.memory_space<vmem>>, vector<16x128xf32>
    %c0_2 = arith.constant 0 : index
    %c0_3 = arith.constant 0 : index
    %4 = vector.load %arg3[%c0_2, %c0_3] : memref<16x128xf32, #tpu.memory_space<vmem>>, vector<16x128xf32>
    %5 = arith.subf %3, %4 : vector<16x128xf32>
    %6 = arith.mulf %5, %5 : vector<16x128xf32>
    %c1_i32 = arith.constant 1 : i32
    %7 = arith.muli %arg0, %c1_i32 : i32
    %8 = arith.addi %7, %arg1 : i32
    %c16_i32 = arith.constant 16 : i32
    %9 = arith.muli %8, %c16_i32 : i32
    %c16_i32_4 = arith.constant 16 : i32
    %10 = arith.addi %9, %c16_i32_4 : i32
    %c16_i32_5 = arith.constant 16 : i32
    %11 = arith.cmpi sle, %10, %c16_i32_5 : i32
    %12 = arith.extui %11 : i1 to i32
    %c0_i32_6 = arith.constant 0 : i32
    %13 = arith.cmpi ne, %12, %c0_i32_6 : i32
    scf.if %13 {
      %c0_10 = arith.constant 0 : index
      %c0_11 = arith.constant 0 : index
      %c0_12 = arith.constant 0 : index
      %18 = vector.load %arg4[%c0_10, %c0_11, %c0_12] : memref<1x8x128xf32, #tpu.memory_space<vmem>>, vector<1x8x128xf32>
      %19 = vector.shape_cast %18 : vector<1x8x128xf32> to vector<8x128xf32>
      %20 = vector.shape_cast %6 : vector<16x128xf32> to vector<2x8x128xf32>
      %cst = arith.constant dense<0.000000e+00> : vector<8x128xf32>
      %21 = vector.multi_reduction <add>, %20, %cst [0] : vector<2x8x128xf32> to vector<8x128xf32>
      %22 = arith.addf %19, %21 : vector<8x128xf32>
      %c0_13 = arith.constant 0 : index
      %c0_14 = arith.constant 0 : index
      %c0_15 = arith.constant 0 : index
      %23 = vector.load %arg4[%c0_13, %c0_14, %c0_15] : memref<1x8x128xf32, #tpu.memory_space<vmem>>, vector<1x8x128xf32>
      %24 = vector.shape_cast %23 : vector<1x8x128xf32> to vector<8x128xf32>
      %25 = vector.shape_cast %22 : vector<8x128xf32> to vector<1x8x128xf32>
      tpu.vector_store %arg4[%c0_13, %c0_14, %c0_15], %25 {strides = array<i32>} : memref<1x8x128xf32, #tpu.memory_space<vmem>>, vector<1x8x128xf32>,
    } else {
    }
    %c16_i32_7 = arith.constant 16 : i32
    %14 = arith.addi %9, %c16_i32_7 : i32
    %c16_i32_8 = arith.constant 16 : i32
    %15 = arith.cmpi sgt, %14, %c16_i32_8 : i32
    %16 = arith.extui %15 : i1 to i32
    %c0_i32_9 = arith.constant 0 : i32
    %17 = arith.cmpi ne, %16, %c0_i32_9 : i32
    scf.if %17 {
      %18 = tpu.iota {dimensions = array<i32: 0>} : vector<16x128xi32>
      %19 = vector.broadcast %9 : i32 to vector<16x128xi32>
      %20 = arith.addi %19, %18 : vector<16x128xi32>
      %c16_i32_10 = arith.constant 16 : i32
      %21 = vector.broadcast %c16_i32_10 : i32 to vector<16x128xi32>
      %22 = arith.cmpi slt, %20, %21 : vector<16x128xi32>
      %cst = arith.constant 0.000000e+00 : f32
      %23 = vector.broadcast %cst : f32 to vector<16x128xf32>
      %24 = arith.select %22, %6, %23 : vector<16x128xi1>, vector<16x128xf32>
      %c0_11 = arith.constant 0 : index
      %c0_12 = arith.constant 0 : index
      %c0_13 = arith.constant 0 : index
      %25 = vector.load %arg4[%c0_11, %c0_12, %c0_13] : memref<1x8x128xf32, #tpu.memory_space<vmem>>, vector<1x8x128xf32>
      %26 = vector.shape_cast %25 : vector<1x8x128xf32> to vector<8x128xf32>
      %27 = vector.shape_cast %24 : vector<16x128xf32> to vector<2x8x128xf32>
      %cst_14 = arith.constant dense<0.000000e+00> : vector<8x128xf32>
      %28 = vector.multi_reduction <add>, %27, %cst_14 [0] : vector<2x8x128xf32> to vector<8x128xf32>
      %29 = arith.addf %26, %28 : vector<8x128xf32>
      %c0_15 = arith.constant 0 : index
      %c0_16 = arith.constant 0 : index
      %c0_17 = arith.constant 0 : index
      %30 = vector.load %arg4[%c0_15, %c0_16, %c0_17] : memref<1x8x128xf32, #tpu.memory_space<vmem>>, vector<1x8x128xf32>
      %31 = vector.shape_cast %30 : vector<1x8x128xf32> to vector<8x128xf32>
      %32 = vector.shape_cast %29 : vector<8x128xf32> to vector<1x8x128xf32>
      tpu.vector_store %arg4[%c0_15, %c0_16, %c0_17], %32 {strides = array<i32>} : memref<1x8x128xf32, #tpu.memory_space<vmem>>, vector<1x8x128xf32>,
    } else {
    }
    return
  }
  func.func @transform_0(%arg0: i32, %arg1: i32) -> (i32, i32) {
    %c1_i32 = arith.constant 1 : i32
    %0 = arith.muli %arg0, %c1_i32 : i32
    %1 = arith.addi %0, %arg1 : i32
    %c0_i32 = arith.constant 0 : i32
    %2 = arith.minsi %1, %c0_i32 : i32
    %c0_i32_0 = arith.constant 0 : i32
    %c0_i32_1 = arith.constant 0 : i32
    return %2, %c0_i32_0 : i32, i32
  }
  func.func @transform_1(%arg0: i32, %arg1: i32) -> (i32, i32) {
    %c1_i32 = arith.constant 1 : i32
    %0 = arith.muli %arg0, %c1_i32 : i32
    %1 = arith.addi %0, %arg1 : i32
    %c0_i32 = arith.constant 0 : i32
    %2 = arith.minsi %1, %c0_i32 : i32
    %c0_i32_0 = arith.constant 0 : i32
    %c0_i32_1 = arith.constant 0 : i32
    return %2, %c0_i32_0 : i32, i32
  }
  func.func @transform_2(%arg0: i32, %arg1: i32) -> (i32, i32, i32) {
    %c0_i32 = arith.constant 0 : i32
    %c0_i32_0 = arith.constant 0 : i32
    %c0_i32_1 = arith.constant 0 : i32
    return %arg0, %c0_i32, %c0_i32_0 : i32, i32, i32
  }
}

</mosaic_0001>

<llo_original>
// kernel: loss_mse.1
$region0: #{loss_mse.1}
  #allocation0 [shape = 'u32[]', space=smem, size = 0x4, offset = 0x4, fixed_abs, tag = 'smem constant byte address 0x4 - core index']
  #allocation1 [shape = 'u32[144,128]{1,0:T(1,128)}', space=vmem, size = 0x12000, scoped, tag = 'internal scratch']
  %s0 = inlined_call_operand.vmem [shape: f32[16,128], index: 0, kind: input, shape index: {}]
  %s1 = inlined_call_operand.vmem [shape: f32[16,128], index: 1, kind: input, shape index: {}]
  %s2 = inlined_call_operand.vmem [shape: f32[1,8,128], index: 2, kind: output, shape index: {}]
  %s3 = sld [smem:[#allocation0]]
  $region30: #{loss_mse.1} parent=0
    _
  %s5 = ssub.s32 1, %s3
  %s6 = scalar_select 0, %s5, %s3
  // Predicated region
  $region2: #{loss_mse.1} parent=0 // pred_check
    _
  $region3: #{loss_mse.1} parent=0 // pred_check_branch
    %8 = sbr.rel (0) target = $region5
  $region4: #{loss_mse.1} parent=0 // pred_region
    %s9 = sadd.s32 0, 0
    %p10 = scmp.lt.s32.totalorder %s9, 0
    %s11 = scalar_select %p10, %s9, 0
    %s12 = smul.u32 2, %s11
    %p13 = scmp.lt.s32.totalorder %s12, 1
    %s14 = scalar_select %p13, %s12, 1
    %s15 = smul.addr %s14, 8
    %s16 = scalar_lea.vmem %s0, %s15
    %s17 = sadd.s32 0, 0
    %p18 = scmp.lt.s32.totalorder %s17, 0
    %s19 = scalar_select %p18, %s17, 0
    %s20 = smul.u32 2, %s19
  $region5: #{loss_mse.1} parent=0 // pred_fallthru
    _
  // Predicated region
  $region6: #{loss_mse.1} parent=0 // pred_check
    _
  $region7: #{loss_mse.1} parent=0 // pred_check_branch
    %22 = sbr.rel (0) target = $region9
  $region8: #{loss_mse.1} parent=0 // pred_region
    %s23 = sadd.s32 0, 0
    %p24 = scmp.lt.s32.totalorder %s23, 0
    %s25 = scalar_select %p24, %s23, 0
    %s26 = smul.u32 2, %s25
    %p27 = scmp.lt.s32.totalorder %s26, 1
    %s28 = scalar_select %p27, %s26, 1
    %s29 = smul.addr %s28, 8
    %s30 = scalar_lea.vmem %s1, %s29
    %s31 = sadd.s32 0, 0
    %p32 = scmp.lt.s32.totalorder %s31, 0
    %s33 = scalar_select %p32, %s31, 0
    %s34 = smul.u32 2, %s33
  $region9: #{loss_mse.1} parent=0 // pred_fallthru
    _
  %s35 = sadd.s32 0, 0
  %p36 = scmp.lt.s32.totalorder %s35, 0
  %s37 = scalar_select %p36, %s35, 0
  %s38 = smul.u32 2, %s37
  %p39 = scmp.lt.s32.totalorder %s38, 1
  %s40 = scalar_select %p39, %s38, 1
  %s41 = smul.addr %s40, 8
  %s42 = scalar_lea.vmem %s0, %s41
  %s43 = sadd.s32 0, 0
  %p44 = scmp.lt.s32.totalorder %s43, 0
  %s45 = scalar_select %p44, %s43, 0
  %s46 = smul.u32 2, %s45
  %p47 = scmp.lt.s32.totalorder %s46, 1
  %s48 = scalar_select %p47, %s46, 1
  %s49 = smul.addr %s48, 8
  %s50 = scalar_lea.vmem %s1, %s49
  %s51 = sadd.s32 0, 0
  %p52 = scmp.lt.s32.totalorder %s51, 0
  %s53 = scalar_select %p52, %s51, 0
  %s54 = smul.u32 2, %s53
  %p55 = scmp.lt.s32.totalorder %s54, 1
  %s56 = scalar_select %p55, %s54, 1
  %s57 = smul.addr %s56, 8
  %s58 = scalar_lea.vmem %s0, %s57
  %s59 = sadd.s32 0, 0
  %p60 = scmp.lt.s32.totalorder %s59, 0
  %s61 = scalar_select %p60, %s59, 0
  %s62 = smul.u32 2, %s61
  %s63 = sadd.s32 0, 0
  %p64 = scmp.lt.s32.totalorder %s63, 0
  %s65 = scalar_select %p64, %s63, 0
  %s66 = smul.u32 2, %s65
  %p67 = scmp.lt.s32.totalorder %s66, 1
  %s68 = scalar_select %p67, %s66, 1
  %s69 = smul.addr %s68, 8
  %s70 = scalar_lea.vmem %s1, %s69
  %s71 = sadd.s32 0, 0
  %p72 = scmp.lt.s32.totalorder %s71, 0
  %s73 = scalar_select %p72, %s71, 0
  %s74 = smul.u32 2, %s73
  %p75 = scmp.eq.s32.totalorder 0, 0
  // Predicated region
  $region10: #{loss_mse.1} parent=0 // pred_check
    %p76 = pneg %p75
  $region11: #{loss_mse.1} parent=0 // pred_check_branch
    %78 = sbr.rel (%p76) target = $region13
  $region12: #{loss_mse.1} parent=0 // pred_region
    %79 = vst [vmem:[%s2] sm:$0xff] 0.0
  $region13: #{loss_mse.1} parent=0 // pred_fallthru
    _
  %v80 = vld [vmem:[%s58] sm:$0xff]
  %v81 = vld [vmem:[%s58 + $0x8] sm:$0xff]
  %v82 = vld [vmem:[%s70] sm:$0xff]
  %v83 = vld [vmem:[%s70 + $0x8] sm:$0xff]
  %v84 = vsub.f32 %v80, %v82
  %v85 = vsub.f32 %v81, %v83
  %v86 = vmul.f32 %v84, %v84
  %v87 = vmul.f32 %v85, %v85
  %s88 = sadd.s32 0, 0
  %s89 = smul.u32 %s88, 16
  %s90 = sadd.s32 %s89, 16
  %p91 = scmp.le.s32.totalorder %s90, 16
  // Predicated region
  $region14: #{loss_mse.1} parent=0 // pred_check
    %p92 = pneg %p91
  $region15: #{loss_mse.1} parent=0 // pred_check_branch
    %94 = sbr.rel (%p92) target = $region17
  $region16: #{loss_mse.1} parent=0 // pred_region
    %v95 = vld [vmem:[%s2] sm:$0xff]
    %v96 = vadd.f32 %v86, %v87
    %v97 = vadd.f32 %v95, %v96
    %98 = vst [vmem:[%s2] sm:$0xff] %v97
  $region17: #{loss_mse.1} parent=0 // pred_fallthru
    _
  %p99 = scmp.gt.s32.totalorder %s90, 16
  // Predicated region
  $region18: #{loss_mse.1} parent=0 // pred_check
    %p100 = pneg %p99
  $region19: #{loss_mse.1} parent=0 // pred_check_branch
    %102 = sbr.rel (%p100) target = $region21
  $region20: #{loss_mse.1} parent=0 // pred_region
    %v103 = vlaneseq
    %v104 = vshrl.u32 %v103, 7
    %v105 = vadd.s32 %v104, 8
    %v106 = vstv %s89
    %v107 = vadd.s32 %v106, %v104
    %v108 = vadd.s32 %v106, %v105
    %vm109 = vcmp.lt.s32.totalorder %v107, 16
    %vm110 = vcmp.lt.s32.totalorder %v108, 16
    %v111 = vsel %vm109, %v86, 0.0
    %v112 = vsel %vm110, %v87, 0.0
    %v113 = vld [vmem:[%s2] sm:$0xff]
    %v114 = vadd.f32 %v111, %v112
    %v115 = vadd.f32 %v113, %v114
    %116 = vst [vmem:[%s2] sm:$0xff] %v115
  $region21: #{loss_mse.1} parent=0 // pred_fallthru
    _
  // Predicated region
  $region22: #{loss_mse.1} parent=0 // pred_check
    _
  $region23: #{loss_mse.1} parent=0 // pred_check_branch
    %118 = sbr.rel (0) target = $region25
  $region24: #{loss_mse.1} parent=0 // pred_region
    _
  $region25: #{loss_mse.1} parent=0 // pred_fallthru
    _
  // Predicated region
  $region26: #{loss_mse.1} parent=0 // pred_check
    _
  $region27: #{loss_mse.1} parent=0 // pred_check_branch
    %120 = sbr.rel (0) target = $region29
  $region28: #{loss_mse.1} parent=0 // pred_region
    _
  $region29: #{loss_mse.1} parent=0 // pred_fallthru
    _

</llo_original>
